<compile_context>
chip_gen: v7x
topology: tpu7x:2x2x1
jax: 0.10.0
libtpu: 0.0.40
codegen_flags: <defaults>
</compile_context>

<pallas_src>
import functools

import jax
import jax.numpy as jnp
from jax.experimental import pallas as pl
from jax.experimental.pallas import tpu as pltpu


def _round_up(x, m):
    return (x + m - 1) // m * m


def deeponet_kernel(x_ref, w1_ref, w23_ref, wf_ref, b_ref, out_ref, *,
                    hidden_p, out_p):
    """One batch tile of the fused branch+trunk DeepONet forward.

    x_ref  : (tile_b, branch_in + trunk_in) f32   concatenated inputs
    w1_ref : (branch_in + trunk_in, 2P)     bf16  block-diag first layer
    w23_ref: (2, 2P, 2P)                    bf16  block-diag hidden layers
    wf_ref : (P, P_out)                     bf16  final fc
    b_ref  : (4, max(2P, P_out))            f32   biases (3 fused rows + fc)
    out_ref: (tile_b, P_out)                f32
    """
    f32, bf16 = jnp.float32, jnp.bfloat16
    two_p = 2 * hidden_p

    def dense(x, w, bias_row, width):
        # bf16 operands feed the MXU; accumulation / bias-add stay f32.
        y = jnp.dot(x.astype(bf16), w, preferred_element_type=f32)
        return y + b_ref[bias_row:bias_row + 1, :width]

    # Three fused (Linear -> Tanh) layers: left P lanes = branch net,
    # right P lanes = trunk net (block-diagonal weights keep them separate).
    h = jnp.tanh(dense(x_ref[...], w1_ref[...], 0, two_p))
    h = jnp.tanh(dense(h, w23_ref[0], 1, two_p))
    h = jnp.tanh(dense(h, w23_ref[1], 2, two_p))

    # f = branch * trunk, then final Linear (output padded to P_out lanes).
    f = h[:, :hidden_p] * h[:, hidden_p:]
    out_ref[...] = dense(f, wf_ref[...], 3, out_p).astype(out_ref.dtype)


def deeponet_forward(branch_input, trunk_input, params, *, tile_b=512):
    """DeepONet forward with a single Pallas TPU kernel.

    branch_input: (B, branch_in) f32
    trunk_input : (B, trunk_in)  f32
    params      : dict of pre-transposed weights (in, out) and biases (1, out)
    """
    B, branch_in = branch_input.shape
    Bt, trunk_in = trunk_input.shape
    assert Bt == B, "branch/trunk batch mismatch"
    hidden = params["bw2"].shape[0]
    out_dim = params["fc_w"].shape[1]

    P = _round_up(hidden, 128)          # lane-aligned hidden width
    P_out = _round_up(out_dim, 128)     # lane-aligned output width
    P2 = 2 * P
    BW = max(P2, P_out)                 # common bias-slab width
    K1 = branch_in + trunk_in

    f32, bf16 = jnp.float32, jnp.bfloat16

    # ----- fused input: [branch | trunk] along features -----
    x = jnp.concatenate([branch_input.astype(f32), trunk_input.astype(f32)],
                        axis=1)                                   # (B, K1)

    # ----- block-diagonal fused weights (zero off-diagonals are exact) -----
    w1 = jnp.zeros((K1, P2), f32)
    w1 = w1.at[:branch_in, :hidden].set(params["bw1"])
    w1 = w1.at[branch_in:, P:P + hidden].set(params["tw1"])
    w1 = w1.astype(bf16)                                          # (K1, 2P)

    def hidden_block(bw, tw):
        w = jnp.zeros((P2, P2), f32)
        w = w.at[:hidden, :hidden].set(bw)
        w = w.at[P:P + hidden, P:P + hidden].set(tw)
        return w

    w23 = jnp.stack([hidden_block(params["bw2"], params["tw2"]),
                     hidden_block(params["bw3"], params["tw3"])]).astype(bf16)

    wf = jnp.zeros((P, P_out), f32)
    wf = wf.at[:hidden, :out_dim].set(params["fc_w"]).astype(bf16)

    def bias_row(bb, tb):
        row = jnp.zeros((1, BW), f32)
        row = row.at[:, :bb.shape[1]].set(bb)
        row = row.at[:, P:P + tb.shape[1]].set(tb)
        return row

    fc_row = jnp.zeros((1, BW), f32).at[:, :out_dim].set(params["fc_b"])
    b_stack = jnp.concatenate([
        bias_row(params["bb1"], params["tb1"]),
        bias_row(params["bb2"], params["tb2"]),
        bias_row(params["bb3"], params["tb3"]),
        fc_row,
    ], axis=0)                                                    # (4, BW)

    # ----- batch tiling: pad batch to a tile multiple, slice back after -----
    tile_b = _round_up(max(8, min(tile_b, _round_up(B, 8))), 8)
    Bp = _round_up(B, tile_b)
    if Bp != B:
        x = jnp.pad(x, ((0, Bp - B), (0, 0)))

    kernel = functools.partial(deeponet_kernel, hidden_p=P, out_p=P_out)

    out_padded = pl.pallas_call(
        kernel,
        out_shape=jax.ShapeDtypeStruct((Bp, P_out), f32),
        grid_spec=pl.GridSpec(
            grid=(Bp // tile_b,),
            in_specs=[
                pl.BlockSpec((tile_b, K1), lambda i: (i, 0)),
                pl.BlockSpec((K1, P2), lambda i: (0, 0)),
                pl.BlockSpec((2, P2, P2), lambda i: (0, 0, 0)),
                pl.BlockSpec((P, P_out), lambda i: (0, 0)),
                pl.BlockSpec((4, BW), lambda i: (0, 0)),
            ],
            out_specs=pl.BlockSpec((tile_b, P_out), lambda i: (i, 0)),
        ),
        compiler_params=pltpu.CompilerParams(
            dimension_semantics=("parallel",),
        ),
    )(x, w1, w23, wf, b_stack)

    # Drop batch padding and the zero-padded output columns.
    return out_padded[:B, :out_dim]


def init_params(key, branch_input_dim, trunk_input_dim, hidden_dim, out_dim):
    """PyTorch-style uniform(+/- 1/sqrt(fan_in)) init; weights stored (in, out)."""
    def linear(key, fan_in, fan_out):
        kw, kb = jax.random.split(key)
        bound = 1.0 / jnp.sqrt(fan_in)
        w = jax.random.uniform(kw, (fan_in, fan_out), jnp.float32, -bound, bound)
        b = jax.random.uniform(kb, (1, fan_out), jnp.float32, -bound, bound)
        return w, b

    keys = jax.random.split(key, 7)
    p = {}
    p["bw1"], p["bb1"] = linear(keys[0], branch_input_dim, hidden_dim)
    p["bw2"], p["bb2"] = linear(keys[1], hidden_dim, hidden_dim)
    p["bw3"], p["bb3"] = linear(keys[2], hidden_dim, hidden_dim)
    p["tw1"], p["tb1"] = linear(keys[3], trunk_input_dim, hidden_dim)
    p["tw2"], p["tb2"] = linear(keys[4], hidden_dim, hidden_dim)
    p["tw3"], p["tb3"] = linear(keys[5], hidden_dim, hidden_dim)
    p["fc_w"], p["fc_b"] = linear(keys[6], hidden_dim, out_dim)
    return p


def deeponet_reference(branch_input, trunk_input, p, matmul_dtype=jnp.float32):
    """Pure-JAX reference. matmul_dtype=bf16 mimics the kernel's MXU casts."""
    f32 = jnp.float32

    def dense(x, w, b):
        return jnp.dot(x.astype(matmul_dtype), w.astype(matmul_dtype),
                       preferred_element_type=f32) + b

    b = branch_input
    b = jnp.tanh(dense(b, p["bw1"], p["bb1"]))
    b = jnp.tanh(dense(b, p["bw2"], p["bb2"]))
    b = jnp.tanh(dense(b, p["bw3"], p["bb3"]))
    t = trunk_input
    t = jnp.tanh(dense(t, p["tw1"], p["tb1"]))
    t = jnp.tanh(dense(t, p["tw2"], p["tb2"]))
    t = jnp.tanh(dense(t, p["tw3"], p["tb3"]))
    return dense(b * t, p["fc_w"], p["fc_b"])


if __name__ == "__main__":
    # Small shapes consistent with the module defaults (hidden_dim=128,
    # out_dim=9).  Batch deliberately not a multiple of 8 to exercise the
    # batch-padding path.
    B = 100
    BRANCH_IN = 16
    TRUNK_IN = 8
    HIDDEN = 128
    OUT_DIM = 9

    key = jax.random.PRNGKey(0)
    k_params, k_branch, k_trunk = jax.random.split(key, 3)

    params = init_params(k_params, BRANCH_IN, TRUNK_IN, HIDDEN, OUT_DIM)
    branch_input = jax.random.normal(k_branch, (B, BRANCH_IN), jnp.float32)
    trunk_input = jax.random.normal(k_trunk, (B, TRUNK_IN), jnp.float32)

    out = deeponet_forward(branch_input, trunk_input, params)
    out = jax.block_until_ready(out)
    assert out.shape == (B, OUT_DIM), out.shape

    # Tight check vs a reference that mimics the kernel's bf16 matmuls.
    ref_bf16 = deeponet_reference(branch_input, trunk_input, params,
                                  matmul_dtype=jnp.bfloat16)
    assert jnp.allclose(out, ref_bf16, atol=1e-2, rtol=1e-2), (
        "mismatch vs bf16 reference, max abs err = "
        + str(float(jnp.max(jnp.abs(out - ref_bf16)))))

    # Loose check vs the full-f32 reference (bf16 MXU precision).
    ref_f32 = deeponet_reference(branch_input, trunk_input, params,
                                 matmul_dtype=jnp.float32)
    assert jnp.allclose(out, ref_f32, atol=5e-2, rtol=5e-2), (
        "mismatch vs f32 reference, max abs err = "
        + str(float(jnp.max(jnp.abs(out - ref_f32)))))

    print("KERNEL_OK")
</pallas_src>

<mosaic_0001>
module attributes {stable_mosaic.version = 11 : i64} {
  func.func @deeponet_kernel(%arg0: i32, %arg1: memref<104x24xf32, #tpu.memory_space<vmem>>, %arg2: memref<24x256xbf16, #tpu.memory_space<vmem>>, %arg3: memref<2x256x256xbf16, #tpu.memory_space<vmem>>, %arg4: memref<128x128xbf16, #tpu.memory_space<vmem>>, %arg5: memref<4x256xf32, #tpu.memory_space<vmem>>, %arg6: memref<104x128xf32, #tpu.memory_space<vmem>>) attributes {dimension_semantics = [#tpu.dimension_semantics<parallel>], iteration_bounds = array<i64: 1>, scalar_prefetch = 0 : i64, scratch_operands = 0 : i64, tpu.core_type = #tpu.core_type<tc>, window_params = [{transform_indices = @transform_0, window_bounds = array<i64: 104, 24>}, {pipeline_mode = #tpu.pipeline_mode<synchronous>, transform_indices = @transform_1, window_bounds = array<i64: 24, 256>}, {pipeline_mode = #tpu.pipeline_mode<synchronous>, transform_indices = @transform_2, window_bounds = array<i64: 2, 256, 256>}, {pipeline_mode = #tpu.pipeline_mode<synchronous>, transform_indices = @transform_3, window_bounds = array<i64: 128, 128>}, {pipeline_mode = #tpu.pipeline_mode<synchronous>, transform_indices = @transform_4, window_bounds = array<i64: 4, 256>}, {transform_indices = @transform_5, window_bounds = array<i64: 104, 128>}]} {
    %c0 = arith.constant 0 : index
    %c0_0 = arith.constant 0 : index
    %0 = vector.load %arg1[%c0, %c0_0] : memref<104x24xf32, #tpu.memory_space<vmem>>, vector<104x24xf32>
    %c0_1 = arith.constant 0 : index
    %c0_2 = arith.constant 0 : index
    %1 = vector.load %arg2[%c0_1, %c0_2] : memref<24x256xbf16, #tpu.memory_space<vmem>>, vector<24x256xbf16>
    %2 = arith.truncf %0 : vector<104x24xf32> to vector<104x24xbf16>
    %cst = arith.constant dense<0.000000e+00> : vector<104x256xf32>
    %3 = tpu.matmul %2, %1, %cst {dimension_numbers = #tpu.dot_dimension_numbers<[1], [0], [0], [1], [0, 0, 1, 1], [], []>} : vector<104x24xbf16>, vector<24x256xbf16>, vector<104x256xf32> -> vector<104x256xf32>
    %c0_3 = arith.constant 0 : index
    %c0_4 = arith.constant 0 : index
    %4 = vector.load %arg5[%c0_3, %c0_4] : memref<4x256xf32, #tpu.memory_space<vmem>>, vector<1x256xf32>
    %5 = vector.broadcast %4 : vector<1x256xf32> to vector<104x256xf32>
    %6 = arith.addf %3, %5 : vector<104x256xf32>
    %7 = math.tanh %6 : vector<104x256xf32>
    %c0_5 = arith.constant 0 : index
    %c0_6 = arith.constant 0 : index
    %c0_7 = arith.constant 0 : index
    %8 = vector.load %arg3[%c0_5, %c0_6, %c0_7] : memref<2x256x256xbf16, #tpu.memory_space<vmem>>, vector<1x256x256xbf16>
    %9 = vector.shape_cast %8 : vector<1x256x256xbf16> to vector<256x256xbf16>
    %10 = arith.truncf %7 : vector<104x256xf32> to vector<104x256xbf16>
    %cst_8 = arith.constant dense<0.000000e+00> : vector<104x256xf32>
    %11 = tpu.matmul %10, %9, %cst_8 {dimension_numbers = #tpu.dot_dimension_numbers<[1], [0], [0], [1], [0, 0, 1, 1], [], []>} : vector<104x256xbf16>, vector<256x256xbf16>, vector<104x256xf32> -> vector<104x256xf32>
    %c1 = arith.constant 1 : index
    %c0_9 = arith.constant 0 : index
    %12 = vector.load %arg5[%c1, %c0_9] : memref<4x256xf32, #tpu.memory_space<vmem>>, vector<1x256xf32>
    %13 = vector.broadcast %12 : vector<1x256xf32> to vector<104x256xf32>
    %14 = arith.addf %11, %13 : vector<104x256xf32>
    %15 = math.tanh %14 : vector<104x256xf32>
    %c1_10 = arith.constant 1 : index
    %c0_11 = arith.constant 0 : index
    %c0_12 = arith.constant 0 : index
    %16 = vector.load %arg3[%c1_10, %c0_11, %c0_12] : memref<2x256x256xbf16, #tpu.memory_space<vmem>>, vector<1x256x256xbf16>
    %17 = vector.shape_cast %16 : vector<1x256x256xbf16> to vector<256x256xbf16>
    %18 = arith.truncf %15 : vector<104x256xf32> to vector<104x256xbf16>
    %cst_13 = arith.constant dense<0.000000e+00> : vector<104x256xf32>
    %19 = tpu.matmul %18, %17, %cst_13 {dimension_numbers = #tpu.dot_dimension_numbers<[1], [0], [0], [1], [0, 0, 1, 1], [], []>} : vector<104x256xbf16>, vector<256x256xbf16>, vector<104x256xf32> -> vector<104x256xf32>
    %c2 = arith.constant 2 : index
    %c0_14 = arith.constant 0 : index
    %20 = vector.load %arg5[%c2, %c0_14] : memref<4x256xf32, #tpu.memory_space<vmem>>, vector<1x256xf32>
    %21 = vector.broadcast %20 : vector<1x256xf32> to vector<104x256xf32>
    %22 = arith.addf %19, %21 : vector<104x256xf32>
    %23 = math.tanh %22 : vector<104x256xf32>
    %24 = vector.extract_strided_slice %23 {offsets = [0, 0], sizes = [104, 128], strides = [1, 1]} : vector<104x256xf32> to vector<104x128xf32>
    %25 = vector.extract_strided_slice %23 {offsets = [0, 128], sizes = [104, 128], strides = [1, 1]} : vector<104x256xf32> to vector<104x128xf32>
    %26 = arith.mulf %24, %25 : vector<104x128xf32>
    %c0_15 = arith.constant 0 : index
    %c0_16 = arith.constant 0 : index
    %27 = vector.load %arg4[%c0_15, %c0_16] : memref<128x128xbf16, #tpu.memory_space<vmem>>, vector<128x128xbf16>
    %28 = arith.truncf %26 : vector<104x128xf32> to vector<104x128xbf16>
    %cst_17 = arith.constant dense<0.000000e+00> : vector<104x128xf32>
    %29 = tpu.matmul %28, %27, %cst_17 {dimension_numbers = #tpu.dot_dimension_numbers<[1], [0], [0], [1], [0, 0, 1, 1], [], []>} : vector<104x128xbf16>, vector<128x128xbf16>, vector<104x128xf32> -> vector<104x128xf32>
    %c3 = arith.constant 3 : index
    %c0_18 = arith.constant 0 : index
    %30 = vector.load %arg5[%c3, %c0_18] : memref<4x256xf32, #tpu.memory_space<vmem>>, vector<1x128xf32>
    %31 = vector.broadcast %30 : vector<1x128xf32> to vector<104x128xf32>
    %32 = arith.addf %29, %31 : vector<104x128xf32>
    %c0_19 = arith.constant 0 : index
    %c0_20 = arith.constant 0 : index
    %33 = vector.load %arg6[%c0_19, %c0_20] : memref<104x128xf32, #tpu.memory_space<vmem>>, vector<104x128xf32>
    tpu.vector_store %arg6[%c0_19, %c0_20], %32 {strides = array<i32>} : memref<104x128xf32, #tpu.memory_space<vmem>>, vector<104x128xf32>,
    return
  }
  func.func @transform_0(%arg0: i32) -> (i32, i32) {
    %c0_i32 = arith.constant 0 : i32
    %c0_i32_0 = arith.constant 0 : i32
    return %arg0, %c0_i32 : i32, i32
  }
  func.func @transform_1(%arg0: i32) -> (i32, i32) {
    %c0_i32 = arith.constant 0 : i32
    %c0_i32_0 = arith.constant 0 : i32
    %c0_i32_1 = arith.constant 0 : i32
    return %c0_i32, %c0_i32_0 : i32, i32
  }
  func.func @transform_2(%arg0: i32) -> (i32, i32, i32) {
    %c0_i32 = arith.constant 0 : i32
    %c0_i32_0 = arith.constant 0 : i32
    %c0_i32_1 = arith.constant 0 : i32
    %c0_i32_2 = arith.constant 0 : i32
    return %c0_i32, %c0_i32_0, %c0_i32_1 : i32, i32, i32
  }
  func.func @transform_3(%arg0: i32) -> (i32, i32) {
    %c0_i32 = arith.constant 0 : i32
    %c0_i32_0 = arith.constant 0 : i32
    %c0_i32_1 = arith.constant 0 : i32
    return %c0_i32, %c0_i32_0 : i32, i32
  }
  func.func @transform_4(%arg0: i32) -> (i32, i32) {
    %c0_i32 = arith.constant 0 : i32
    %c0_i32_0 = arith.constant 0 : i32
    %c0_i32_1 = arith.constant 0 : i32
    return %c0_i32, %c0_i32_0 : i32, i32
  }
  func.func @transform_5(%arg0: i32) -> (i32, i32) {
    %c0_i32 = arith.constant 0 : i32
    %c0_i32_0 = arith.constant 0 : i32
    return %arg0, %c0_i32 : i32, i32
  }
}

</mosaic_0001>

<llo_original>
// kernel: tpu_custom_call.1
$region0: #{tpu_custom_call.1}
  #allocation0 [shape = 'u32[]', space=smem, size = 0x4, offset = 0x4, fixed_abs, tag = 'smem constant byte address 0x4 - core index']
  #allocation1 [shape = 'u32[144,128]{1,0:T(1,128)}', space=vmem, size = 0x12000, scoped, tag = 'internal scratch']
  %s0 = inlined_call_operand.vmem [shape: f32[104,24], index: 0, kind: input, shape index: {}]
  %s1 = inlined_call_operand.vmem [shape: bf16[24,256], index: 1, kind: input, shape index: {}]
  %s2 = inlined_call_operand.hbm [shape: bf16[2,256,256], index: 2, kind: input, shape index: {}]
  %s3 = inlined_call_operand.vmem [shape: bf16[128,128], index: 3, kind: input, shape index: {}]
  %s4 = inlined_call_operand.vmem [shape: f32[4,256], index: 4, kind: input, shape index: {}]
  %s5 = inlined_call_operand.hbm [shape: f32[104,128], index: 5, kind: output, shape index: {}]
  %s6 = sld [smem:[#allocation0]]
  $region34: #{tpu_custom_call.1} parent=0
    _
  %s8 = ssub.s32 1, %s6
  %s9 = scalar_select 0, %s8, %s6
  $region1: #{tpu_custom_call.1} parent=0
    #allocation2 [shape = 'u8[262144]{0}', space=vmem, size = 0x40000, scoped, tag = 'input window, operand 2, single buffered']
    #allocation3 [shape = 's32[1]{0}', space=sflag, size = 0x4, scoped, tag = 'scoped memory for tpu_custom_call.1']
    #allocation4 [shape = 's32[1]{0}', space=sflag, size = 0x4, scoped, tag = 'scoped memory for tpu_custom_call.1']
    #allocation5 [shape = 'u8[53248]{0}', space=vmem, size = 0xd000, scoped, tag = 'output window, operand 0, single buffered']
    %10 = vsyncpa [#allocation3], 0
    %11 = vsyncpa [#allocation4], 0
    // Predicated region
    $region2: #{tpu_custom_call.1} parent=1 // pred_check
      _
    $region3: #{tpu_custom_call.1} parent=1 // pred_check_branch
      %13 = sbr.rel (0) target = $region5
    $region4: #{tpu_custom_call.1} parent=1 // pred_region
      _
    $region5: #{tpu_custom_call.1} parent=1 // pred_fallthru
      _
    // Predicated region
    $region6: #{tpu_custom_call.1} parent=1 // pred_check
      _
    $region7: #{tpu_custom_call.1} parent=1 // pred_check_branch
      %15 = sbr.rel (0) target = $region9
    $region8: #{tpu_custom_call.1} parent=1 // pred_region
      _
    $region9: #{tpu_custom_call.1} parent=1 // pred_fallthru
      _
    // Predicated region
    $region10: #{tpu_custom_call.1} parent=1 // pred_check
      _
    $region11: #{tpu_custom_call.1} parent=1 // pred_check_branch
      %17 = sbr.rel (0) target = $region13
    $region12: #{tpu_custom_call.1} parent=1 // pred_region
      %s19 = ssub.s32 8192, 8192
      %20 = vsyncadd [#allocation3], %s19
      %s21 = sshll.u32 [#allocation2], 4
      %s22 = int_to_ptr.vmem [resolvable:$true] %s21
      %27 = dma.hbm_to_vmem [thread:$0]  %s2, 8192, %s22, [#allocation3], 128, 128, 8
    $region13: #{tpu_custom_call.1} parent=1 // pred_fallthru
      _
    // Predicated region
    $region14: #{tpu_custom_call.1} parent=1 // pred_check
      _
    $region15: #{tpu_custom_call.1} parent=1 // pred_check_branch
      %29 = sbr.rel (0) target = $region17
    $region16: #{tpu_custom_call.1} parent=1 // pred_region
      _
    $region17: #{tpu_custom_call.1} parent=1 // pred_fallthru
      _
    // Predicated region
    $region18: #{tpu_custom_call.1} parent=1 // pred_check
      _
    $region19: #{tpu_custom_call.1} parent=1 // pred_check_branch
      %31 = sbr.rel (0) target = $region21
    $region20: #{tpu_custom_call.1} parent=1 // pred_region
      _
    $region21: #{tpu_custom_call.1} parent=1 // pred_fallthru
      _
    // Predicated region
    $region22: #{tpu_custom_call.1} parent=1 // pred_check
      _
    $region23: #{tpu_custom_call.1} parent=1 // pred_check_branch
      %33 = sbr.rel (0) target = $region25
    $region24: #{tpu_custom_call.1} parent=1 // pred_region
      %34 = dma.done [#allocation3], 8192
    $region25: #{tpu_custom_call.1} parent=1 // pred_fallthru
      _
    %v36 = vld [vmem:[%s0] sm:$0xff]
    %v37 = vld [vmem:[%s0 + $0x8] sm:$0xff]
    %v38 = vld [vmem:[%s0 + $0x10] sm:$0xff]
    %v39 = vld [vmem:[%s0 + $0x18] sm:$0xff]
    %v40 = vld [vmem:[%s0 + $0x20] sm:$0xff]
    %v41 = vld [vmem:[%s0 + $0x28] sm:$0xff]
    %v42 = vld [vmem:[%s0 + $0x30] sm:$0xff]
    %v43 = vld [vmem:[%s0 + $0x38] sm:$0xff]
    %v44 = vld [vmem:[%s0 + $0x40] sm:$0xff]
    %v45 = vld [vmem:[%s0 + $0x48] sm:$0xff]
    %v46 = vld [vmem:[%s0 + $0x50] sm:$0xff]
    %v47 = vld [vmem:[%s0 + $0x58] sm:$0xff]
    %v48 = vld [vmem:[%s0 + $0x60] sm:$0xff]
    %v49 = vld [vmem:[%s1] sm:$0xff]
    %v50 = vld [vmem:[%s1 + $0x8] sm:$0xff]
    %v51 = vld [vmem:[%s1 + $0x10] sm:$0xff]
    %v52 = vpack.c.bf16 %v37, %v36
    %v53 = vpack.c.bf16 %v39, %v38
    %v54 = vpack.c.bf16 %v41, %v40
    %v55 = vpack.c.bf16 %v43, %v42
    %v56 = vpack.c.bf16 %v45, %v44
    %v57 = vpack.c.bf16 %v47, %v46
    %v58 = vpack.c.bf16 %v48, %v48
    %v59 = vld [vmem:[%s4] ss:$4 sm:$0x3]
    %v61 = vlaneseq
    %v62 = vshrl.u32 %v61, 7
    %v63 = vsub.s32 0, %v62
    %v64 = vrot.slane %v59, %v63
    %v65 = vlaneseq
    %v66 = vshrl.u32 %v65, 7
    %v67 = vsub.s32 1, %v66
    %v68 = vrot.slane %v59, %v67
    %v74 = vunpack.c.l.b16 %v49
    %v75 = vunpack.c.h.b16 %v49
    %v76 = vunpack.c.l.b16 %v50
    %v77 = vunpack.c.h.b16 %v50
    %v78 = vunpack.c.l.b16 %v51
    %v79 = vunpack.c.h.b16 %v51
    %v80 = vpack.c.b16 %v76, %v74
    %v81 = vpack.c.b16 %v77, %v75
    %v82 = vpack.c.b16 %v78, %v78
    %v83 = vpack.c.b16 %v79, %v79
    %vm86 = vcmask 195584
    %v88 = vsel %vm86, %v52, 0
    %v91 = vsel %vm86, %v53, 0
    %v94 = vsel %vm86, %v54, 0
    %v97 = vsel %vm86, %v55, 0
    %v100 = vsel %vm86, %v56, 0
    %v103 = vsel %vm86, %v57, 0
    %v106 = vsel %vm86, %v58, 0
    %vm108 = vcmask 1043456
    %v110 = vsel %vm108, %v82, 0
    %v113 = vsel %vm108, %v83, 0
    %115 = vmatprep.subr.bf16.mxu0 %v81
    %116 = vmatpush1.bf16.msra.mxu0 %v80
    %117 = vmatprep.subr.bf16.mxu0 %v113
    %118 = vmatpush1.bf16.msra.mxu0 %v110
    %119 = vmatprep.subr.bf16.mxu0 0
    %120 = vmatpush1.bf16.msra.mxu0 0
    %121 = vmatprep.subr.bf16.mxu0 0
    %122 = vmatpush1.bf16.msra.mxu0 0
    %123 = vmatprep.subr.bf16.mxu0 0
    %124 = vmatpush1.bf16.msra.mxu0 0
    %125 = vmatprep.subr.bf16.mxu0 0
    %126 = vmatpush1.bf16.msra.mxu0 0
    %127 = vmatprep.subr.bf16.mxu0 0
    %128 = vmatpush1.bf16.msra.mxu0 0
    %129 = vmatprep.subr.bf16.mxu0 0
    %130 = vmatpush1.bf16.msra.mxu0 0
    %131 = vmatprep.subr.bf16.mxu0 0
    %132 = vmatpush1.bf16.msra.mxu0 0
    %133 = vmatprep.subr.bf16.mxu0 0
    %134 = vmatpush1.bf16.msra.mxu0 0
    %135 = vmatprep.subr.bf16.mxu0 0
    %136 = vmatpush1.bf16.msra.mxu0 0
    %137 = vmatprep.subr.bf16.mxu0 0
    %138 = vmatpush1.bf16.msra.mxu0 0
    %139 = vmatprep.subr.bf16.mxu0 0
    %140 = vmatpush1.bf16.msra.mxu0 0
    %141 = vmatprep.subr.bf16.mxu0 0
    %142 = vmatpush1.bf16.msra.mxu0 0
    %143 = vmatprep.subr.bf16.mxu0 0
    %144 = vmatpush1.bf16.msra.mxu0 0
    %145 = vmatprep.subr.bf16.mxu0 0
    %146 = vmatpush1.bf16.msra.mxu0 0
    %147 = vmatprep.mubr.bf16.mxu0 0
    %148 = vmatmul.mubr.bf16.gmra.mrb[0].mxu0 %v88
    %v149 = vpop.f32.mrb[0].mxu0
    %v150 = vadd.f32 %v64, %v149
    %v151 = vpop.f32.mrb[0].mxu0
    %v152 = vadd.f32 %v68, %v151
    %v153 = vpop.f32.mrb[0].mxu0
    %v154 = vadd.f32 %v64, %v153
    %v155 = vpop.f32.mrb[0].mxu0
    %v156 = vadd.f32 %v68, %v155
    %157 = vmatprep.mubr.bf16.mxu0 0
    %158 = vmatmul.mubr.bf16.gmra.mrb[0].mxu0 %v91
    %v159 = vpop.f32.mrb[0].mxu0
    %v160 = vadd.f32 %v64, %v159
    %v161 = vpop.f32.mrb[0].mxu0
    %v162 = vadd.f32 %v68, %v161
    %v163 = vpop.f32.mrb[0].mxu0
    %v164 = vadd.f32 %v64, %v163
    %v165 = vpop.f32.mrb[0].mxu0
    %v166 = vadd.f32 %v68, %v165
    %167 = vmatprep.mubr.bf16.mxu0 0
    %168 = vmatmul.mubr.bf16.gmra.mrb[0].mxu0 %v94
    %v169 = vpop.f32.mrb[0].mxu0
    %v170 = vadd.f32 %v64, %v169
    %v171 = vpop.f32.mrb[0].mxu0
    %v172 = vadd.f32 %v68, %v171
    %v173 = vpop.f32.mrb[0].mxu0
    %v174 = vadd.f32 %v64, %v173
    %v175 = vpop.f32.mrb[0].mxu0
    %v176 = vadd.f32 %v68, %v175
    %177 = vmatprep.mubr.bf16.mxu0 0
    %178 = vmatmul.mubr.bf16.gmra.mrb[0].mxu0 %v97
    %v179 = vpop.f32.mrb[0].mxu0
    %v180 = vadd.f32 %v64, %v179
    %v181 = vpop.f32.mrb[0].mxu0
    %v182 = vadd.f32 %v68, %v181
    %v183 = vpop.f32.mrb[0].mxu0
    %v184 = vadd.f32 %v64, %v183
    %v185 = vpop.f32.mrb[0].mxu0
    %v186 = vadd.f32 %v68, %v185
    %187 = vmatprep.mubr.bf16.mxu0 0
    %188 = vmatmul.mubr.bf16.gmra.mrb[0].mxu0 %v100
    %v189 = vpop.f32.mrb[0].mxu0
    %v190 = vadd.f32 %v64, %v189
    %v191 = vpop.f32.mrb[0].mxu0
    %v192 = vadd.f32 %v68, %v191
    %v193 = vpop.f32.mrb[0].mxu0
    %v194 = vadd.f32 %v64, %v193
    %v195 = vpop.f32.mrb[0].mxu0
    %v196 = vadd.f32 %v68, %v195
    %197 = vmatprep.mubr.bf16.mxu0 0
    %198 = vmatmul.mubr.bf16.gmra.mrb[0].mxu0 %v103
    %v199 = vpop.f32.mrb[0].mxu0
    %v200 = vadd.f32 %v64, %v199
    %v201 = vpop.f32.mrb[0].mxu0
    %v202 = vadd.f32 %v68, %v201
    %v203 = vpop.f32.mrb[0].mxu0
    %v204 = vadd.f32 %v64, %v203
    %v205 = vpop.f32.mrb[0].mxu0
    %v206 = vadd.f32 %v68, %v205
    %207 = vmatprep.mubr.bf16.mxu0 0
    %208 = vmatmul.mubr.bf16.gmra.mrb[0].mxu0 %v106
    %v209 = vpop.f32.mrb[0].mxu0
    %v210 = vadd.f32 %v64, %v209
    %v211 = vpop.f32.mrb[0].mxu0
    %v212 = vadd.f32 %v68, %v211
    %v213 = vpop.f32.mrb[0].mxu0
    %v214 = vpop.f32.mrb[0].mxu0
    %215 = vdwg.mxu0
    %v216 = vtanh.pop %v150
    %v217 = vtanh.pop %v152
    %v218 = vtanh.pop %v154
    %v219 = vtanh.pop %v156
    %v220 = vtanh.pop %v160
    %v221 = vtanh.pop %v162
    %v222 = vtanh.pop %v164
    %v223 = vtanh.pop %v166
    %v224 = vtanh.pop %v170
    %v225 = vtanh.pop %v172
    %v226 = vtanh.pop %v174
    %v227 = vtanh.pop %v176
    %v228 = vtanh.pop %v180
    %v229 = vtanh.pop %v182
    %v230 = vtanh.pop %v184
    %v231 = vtanh.pop %v186
    %v232 = vtanh.pop %v190
    %v233 = vtanh.pop %v192
    %v234 = vtanh.pop %v194
    %v235 = vtanh.pop %v196
    %v236 = vtanh.pop %v200
    %v237 = vtanh.pop %v202
    %v238 = vtanh.pop %v204
    %v239 = vtanh.pop %v206
    %v240 = vtanh.pop %v210
    %v241 = vtanh.pop %v212
    %v242 = vld [vmem:[#allocation2] sm:$0xff]
    %v243 = vld [vmem:[#allocation2 + $0x8] sm:$0xff]
    %v244 = vld [vmem:[#allocation2 + $0x10] sm:$0xff]
    %v245 = vld [vmem:[#allocation2 + $0x18] sm:$0xff]
    %v246 = vld [vmem:[#allocation2 + $0x20] sm:$0xff]
    %v247 = vld [vmem:[#allocation2 + $0x28] sm:$0xff]
    %v248 = vld [vmem:[#allocation2 + $0x30] sm:$0xff]
    %v249 = vld [vmem:[#allocation2 + $0x38] sm:$0xff]
    %v250 = vld [vmem:[#allocation2 + $0x40] sm:$0xff]
    %v251 = vld [vmem:[#allocation2 + $0x48] sm:$0xff]
    %v252 = vld [vmem:[#allocation2 + $0x50] sm:$0xff]
    %v253 = vld [vmem:[#allocation2 + $0x58] sm:$0xff]
    %v254 = vld [vmem:[#allocation2 + $0x60] sm:$0xff]
    %v255 = vld [vmem:[#allocation2 + $0x68] sm:$0xff]
    %v256 = vld [vmem:[#allocation2 + $0x70] sm:$0xff]
    %v257 = vld [vmem:[#allocation2 + $0x78] sm:$0xff]
    %v258 = vld [vmem:[#allocation2 + $0x80] sm:$0xff]
    %v259 = vld [vmem:[#allocation2 + $0x88] sm:$0xff]
    %v260 = vld [vmem:[#allocation2 + $0x90] sm:$0xff]
    %v261 = vld [vmem:[#allocation2 + $0x98] sm:$0xff]
    %v262 = vld [vmem:[#allocation2 + $0xa0] sm:$0xff]
    %v263 = vld [vmem:[#allocation2 + $0xa8] sm:$0xff]
    %v264 = vld [vmem:[#allocation2 + $0xb0] sm:$0xff]
    %v265 = vld [vmem:[#allocation2 + $0xb8] sm:$0xff]
    %v266 = vld [vmem:[#allocation2 + $0xc0] sm:$0xff]
    %v267 = vld [vmem:[#allocation2 + $0xc8] sm:$0xff]
    %v268 = vld [vmem:[#allocation2 + $0xd0] sm:$0xff]
    %v269 = vld [vmem:[#allocation2 + $0xd8] sm:$0xff]
    %v270 = vld [vmem:[#allocation2 + $0xe0] sm:$0xff]
    %v271 = vld [vmem:[#allocation2 + $0xe8] sm:$0xff]
    %v272 = vld [vmem:[#allocation2 + $0xf0] sm:$0xff]
    %v273 = vld [vmem:[#allocation2 + $0xf8] sm:$0xff]
    %v274 = vpack.c.bf16 %v218, %v216
    %v275 = vpack.c.bf16 %v219, %v217
    %v276 = vpack.c.bf16 %v222, %v220
    %v277 = vpack.c.bf16 %v223, %v221
    %v278 = vpack.c.bf16 %v226, %v224
    %v279 = vpack.c.bf16 %v227, %v225
    %v280 = vpack.c.bf16 %v230, %v228
    %v281 = vpack.c.bf16 %v231, %v229
    %v282 = vpack.c.bf16 %v234, %v232
    %v283 = vpack.c.bf16 %v235, %v233
    %v284 = vpack.c.bf16 %v238, %v236
    %v285 = vpack.c.bf16 %v239, %v237
    %v286 = vpack.c.bf16 %v240, %v240
    %v287 = vpack.c.bf16 %v241, %v241
    %s288 = scalar_lea.vmem %s4, 1
    %v289 = vld [vmem:[%s288] ss:$4 sm:$0x3]
    %v291 = vlaneseq
    %v292 = vshrl.u32 %v291, 7
    %v293 = vsub.s32 0, %v292
    %v294 = vrot.slane %v289, %v293
    %v295 = vlaneseq
    %v296 = vshrl.u32 %v295, 7
    %v297 = vsub.s32 1, %v296
    %v298 = vrot.slane %v289, %v297
    %v333 = vunpack.c.l.b16 %v242
    %v334 = vunpack.c.h.b16 %v242
    %v335 = vunpack.c.l.b16 %v243
    %v336 = vunpack.c.h.b16 %v243
    %v337 = vunpack.c.l.b16 %v244
    %v338 = vunpack.c.h.b16 %v244
    %v339 = vunpack.c.l.b16 %v245
    %v340 = vunpack.c.h.b16 %v245
    %v341 = vunpack.c.l.b16 %v246
    %v342 = vunpack.c.h.b16 %v246
    %v343 = vunpack.c.l.b16 %v247
    %v344 = vunpack.c.h.b16 %v247
    %v345 = vunpack.c.l.b16 %v248
    %v346 = vunpack.c.h.b16 %v248
    %v347 = vunpack.c.l.b16 %v249
    %v348 = vunpack.c.h.b16 %v249
    %v349 = vunpack.c.l.b16 %v250
    %v350 = vunpack.c.h.b16 %v250
    %v351 = vunpack.c.l.b16 %v251
    %v352 = vunpack.c.h.b16 %v251
    %v353 = vunpack.c.l.b16 %v252
    %v354 = vunpack.c.h.b16 %v252
    %v355 = vunpack.c.l.b16 %v253
    %v356 = vunpack.c.h.b16 %v253
    %v357 = vunpack.c.l.b16 %v254
    %v358 = vunpack.c.h.b16 %v254
    %v359 = vunpack.c.l.b16 %v255
    %v360 = vunpack.c.h.b16 %v255
    %v361 = vunpack.c.l.b16 %v256
    %v362 = vunpack.c.h.b16 %v256
    %v363 = vunpack.c.l.b16 %v257
    %v364 = vunpack.c.h.b16 %v257
    %v365 = vunpack.c.l.b16 %v258
    %v366 = vunpack.c.h.b16 %v258
    %v367 = vunpack.c.l.b16 %v259
    %v368 = vunpack.c.h.b16 %v259
    %v369 = vunpack.c.l.b16 %v260
    %v370 = vunpack.c.h.b16 %v260
    %v371 = vunpack.c.l.b16 %v261
    %v372 = vunpack.c.h.b16 %v261
    %v373 = vunpack.c.l.b16 %v262
    %v374 = vunpack.c.h.b16 %v262
    %v375 = vunpack.c.l.b16 %v263
    %v376 = vunpack.c.h.b16 %v263
    %v377 = vunpack.c.l.b16 %v264
    %v378 = vunpack.c.h.b16 %v264
    %v379 = vunpack.c.l.b16 %v265
    %v380 = vunpack.c.h.b16 %v265
    %v381 = vunpack.c.l.b16 %v266
    %v382 = vunpack.c.h.b16 %v266
    %v383 = vunpack.c.l.b16 %v267
    %v384 = vunpack.c.h.b16 %v267
    %v385 = vunpack.c.l.b16 %v268
    %v386 = vunpack.c.h.b16 %v268
    %v387 = vunpack.c.l.b16 %v269
    %v388 = vunpack.c.h.b16 %v269
    %v389 = vunpack.c.l.b16 %v270
    %v390 = vunpack.c.h.b16 %v270
    %v391 = vunpack.c.l.b16 %v271
    %v392 = vunpack.c.h.b16 %v271
    %v393 = vunpack.c.l.b16 %v272
    %v394 = vunpack.c.h.b16 %v272
    %v395 = vunpack.c.l.b16 %v273
    %v396 = vunpack.c.h.b16 %v273
    %v397 = vpack.c.b16 %v335, %v333
    %v398 = vpack.c.b16 %v336, %v334
    %v399 = vpack.c.b16 %v339, %v337
    %v400 = vpack.c.b16 %v340, %v338
    %v401 = vpack.c.b16 %v343, %v341
    %v402 = vpack.c.b16 %v344, %v342
    %v403 = vpack.c.b16 %v347, %v345
    %v404 = vpack.c.b16 %v348, %v346
    %v405 = vpack.c.b16 %v351, %v349
    %v406 = vpack.c.b16 %v352, %v350
    %v407 = vpack.c.b16 %v355, %v353
    %v408 = vpack.c.b16 %v356, %v354
    %v409 = vpack.c.b16 %v359, %v357
    %v410 = vpack.c.b16 %v360, %v358
    %v411 = vpack.c.b16 %v363, %v361
    %v412 = vpack.c.b16 %v364, %v362
    %v413 = vpack.c.b16 %v367, %v365
    %v414 = vpack.c.b16 %v368, %v366
    %v415 = vpack.c.b16 %v371, %v369
    %v416 = vpack.c.b16 %v372, %v370
    %v417 = vpack.c.b16 %v375, %v373
    %v418 = vpack.c.b16 %v376, %v374
    %v419 = vpack.c.b16 %v379, %v377
    %v420 = vpack.c.b16 %v380, %v378
    %v421 = vpack.c.b16 %v383, %v381
    %v422 = vpack.c.b16 %v384, %v382
    %v423 = vpack.c.b16 %v387, %v385
    %v424 = vpack.c.b16 %v388, %v386
    %v425 = vpack.c.b16 %v391, %v389
    %v426 = vpack.c.b16 %v392, %v390
    %v427 = vpack.c.b16 %v395, %v393
    %v428 = vpack.c.b16 %v396, %v394
    %461 = vmatprep.subr.bf16.mxu0 %v398
    %462 = vmatpush1.bf16.msra.mxu0 %v397
    %463 = vmatprep.subr.bf16.mxu0 %v400
    %464 = vmatpush1.bf16.msra.mxu0 %v399
    %465 = vmatprep.subr.bf16.mxu0 %v402
    %466 = vmatpush1.bf16.msra.mxu0 %v401
    %467 = vmatprep.subr.bf16.mxu0 %v404
    %468 = vmatpush1.bf16.msra.mxu0 %v403
    %469 = vmatprep.subr.bf16.mxu0 %v406
    %470 = vmatpush1.bf16.msra.mxu0 %v405
    %471 = vmatprep.subr.bf16.mxu0 %v408
    %472 = vmatpush1.bf16.msra.mxu0 %v407
    %473 = vmatprep.subr.bf16.mxu0 %v410
    %474 = vmatpush1.bf16.msra.mxu0 %v409
    %475 = vmatprep.subr.bf16.mxu0 %v412
    %476 = vmatpush1.bf16.msra.mxu0 %v411
    %477 = vmatprep.subr.bf16.mxu0 %v414
    %478 = vmatpush1.bf16.msra.mxu0 %v413
    %479 = vmatprep.subr.bf16.mxu0 %v416
    %480 = vmatpush1.bf16.msra.mxu0 %v415
    %481 = vmatprep.subr.bf16.mxu0 %v418
    %482 = vmatpush1.bf16.msra.mxu0 %v417
    %483 = vmatprep.subr.bf16.mxu0 %v420
    %484 = vmatpush1.bf16.msra.mxu0 %v419
    %485 = vmatprep.subr.bf16.mxu0 %v422
    %486 = vmatpush1.bf16.msra.mxu0 %v421
    %487 = vmatprep.subr.bf16.mxu0 %v424
    %488 = vmatpush1.bf16.msra.mxu0 %v423
    %489 = vmatprep.subr.bf16.mxu0 %v426
    %490 = vmatpush1.bf16.msra.mxu0 %v425
    %491 = vmatprep.subr.bf16.mxu0 %v428
    %492 = vmatpush1.bf16.msra.mxu0 %v427
    %493 = vmatprep.mubr.bf16.mxu0 %v275
    %494 = vmatmul.mubr.bf16.gmra.mrb[0].mxu0 %v274
    %v495 = vpop.f32.mrb[0].mxu0
    %v496 = vadd.f32 %v294, %v495
    %v497 = vpop.f32.mrb[0].mxu0
    %v498 = vadd.f32 %v298, %v497
    %v499 = vpop.f32.mrb[0].mxu0
    %v500 = vadd.f32 %v294, %v499
    %v501 = vpop.f32.mrb[0].mxu0
    %v502 = vadd.f32 %v298, %v501
    %503 = vmatprep.mubr.bf16.mxu0 %v277
    %504 = vmatmul.mubr.bf16.gmra.mrb[0].mxu0 %v276
    %v505 = vpop.f32.mrb[0].mxu0
    %v506 = vadd.f32 %v294, %v505
    %v507 = vpop.f32.mrb[0].mxu0
    %v508 = vadd.f32 %v298, %v507
    %v509 = vpop.f32.mrb[0].mxu0
    %v510 = vadd.f32 %v294, %v509
    %v511 = vpop.f32.mrb[0].mxu0
    %v512 = vadd.f32 %v298, %v511
    %513 = vmatprep.mubr.bf16.mxu0 %v279
    %514 = vmatmul.mubr.bf16.gmra.mrb[0].mxu0 %v278
    %v515 = vpop.f32.mrb[0].mxu0
    %v516 = vadd.f32 %v294, %v515
    %v517 = vpop.f32.mrb[0].mxu0
    %v518 = vadd.f32 %v298, %v517
    %v519 = vpop.f32.mrb[0].mxu0
    %v520 = vadd.f32 %v294, %v519
    %v521 = vpop.f32.mrb[0].mxu0
    %v522 = vadd.f32 %v298, %v521
    %523 = vmatprep.mubr.bf16.mxu0 %v281
    %524 = vmatmul.mubr.bf16.gmra.mrb[0].mxu0 %v280
    %v525 = vpop.f32.mrb[0].mxu0
    %v526 = vadd.f32 %v294, %v525
    %v527 = vpop.f32.mrb[0].mxu0
    %v528 = vadd.f32 %v298, %v527
    %v529 = vpop.f32.mrb[0].mxu0
    %v530 = vadd.f32 %v294, %v529
    %v531 = vpop.f32.mrb[0].mxu0
    %v532 = vadd.f32 %v298, %v531
    %533 = vmatprep.mubr.bf16.mxu0 %v283
    %534 = vmatmul.mubr.bf16.gmra.mrb[0].mxu0 %v282
    %v535 = vpop.f32.mrb[0].mxu0
    %v536 = vadd.f32 %v294, %v535
    %v537 = vpop.f32.mrb[0].mxu0
    %v538 = vadd.f32 %v298, %v537
    %v539 = vpop.f32.mrb[0].mxu0
    %v540 = vadd.f32 %v294, %v539
    %v541 = vpop.f32.mrb[0].mxu0
    %v542 = vadd.f32 %v298, %v541
    %543 = vmatprep.mubr.bf16.mxu0 %v285
    %544 = vmatmul.mubr.bf16.gmra.mrb[0].mxu0 %v284
    %v545 = vpop.f32.mrb[0].mxu0
    %v546 = vadd.f32 %v294, %v545
    %v547 = vpop.f32.mrb[0].mxu0
    %v548 = vadd.f32 %v298, %v547
    %v549 = vpop.f32.mrb[0].mxu0
    %v550 = vadd.f32 %v294, %v549
    %v551 = vpop.f32.mrb[0].mxu0
    %v552 = vadd.f32 %v298, %v551
    %553 = vmatprep.mubr.bf16.mxu0 %v287
    %554 = vmatmul.mubr.bf16.gmra.mrb[0].mxu0 %v286
    %v555 = vpop.f32.mrb[0].mxu0
    %v556 = vadd.f32 %v294, %v555
    %v557 = vpop.f32.mrb[0].mxu0
    %v558 = vadd.f32 %v298, %v557
    %v559 = vpop.f32.mrb[0].mxu0
    %v560 = vpop.f32.mrb[0].mxu0
    %561 = vdwg.mxu0
    %v562 = vtanh.pop %v496
    %v563 = vtanh.pop %v498
    %v564 = vtanh.pop %v500
    %v565 = vtanh.pop %v502
    %v566 = vtanh.pop %v506
    %v567 = vtanh.pop %v508
    %v568 = vtanh.pop %v510
    %v569 = vtanh.pop %v512
    %v570 = vtanh.pop %v516
    %v571 = vtanh.pop %v518
    %v572 = vtanh.pop %v520
    %v573 = vtanh.pop %v522
    %v574 = vtanh.pop %v526
    %v575 = vtanh.pop %v528
    %v576 = vtanh.pop %v530
    %v577 = vtanh.pop %v532
    %v578 = vtanh.pop %v536
    %v579 = vtanh.pop %v538
    %v580 = vtanh.pop %v540
    %v581 = vtanh.pop %v542
    %v582 = vtanh.pop %v546
    %v583 = vtanh.pop %v548
    %v584 = vtanh.pop %v550
    %v585 = vtanh.pop %v552
    %v586 = vtanh.pop %v556
    %v587 = vtanh.pop %v558
    %s588 = scalar_lea.vmem [#allocation2], 256
    %v589 = vld [vmem:[%s588] sm:$0xff]
    %v590 = vld [vmem:[%s588 + $0x8] sm:$0xff]
    %v591 = vld [vmem:[%s588 + $0x10] sm:$0xff]
    %v592 = vld [vmem:[%s588 + $0x18] sm:$0xff]
    %v593 = vld [vmem:[%s588 + $0x20] sm:$0xff]
    %v594 = vld [vmem:[%s588 + $0x28] sm:$0xff]
    %v595 = vld [vmem:[%s588 + $0x30] sm:$0xff]
    %v596 = vld [vmem:[%s588 + $0x38] sm:$0xff]
    %v597 = vld [vmem:[%s588 + $0x40] sm:$0xff]
    %v598 = vld [vmem:[%s588 + $0x48] sm:$0xff]
    %v599 = vld [vmem:[%s588 + $0x50] sm:$0xff]
    %v600 = vld [vmem:[%s588 + $0x58] sm:$0xff]
    %v601 = vld [vmem:[%s588 + $0x60] sm:$0xff]
    %v602 = vld [vmem:[%s588 + $0x68] sm:$0xff]
    %v603 = vld [vmem:[%s588 + $0x70] sm:$0xff]
    %v604 = vld [vmem:[%s588 + $0x78] sm:$0xff]
    %v605 = vld [vmem:[%s588 + $0x80] sm:$0xff]
    %v606 = vld [vmem:[%s588 + $0x88] sm:$0xff]
    %v607 = vld [vmem:[%s588 + $0x90] sm:$0xff]
    %v608 = vld [vmem:[%s588 + $0x98] sm:$0xff]
    %v609 = vld [vmem:[%s588 + $0xa0] sm:$0xff]
    %v610 = vld [vmem:[%s588 + $0xa8] sm:$0xff]
    %v611 = vld [vmem:[%s588 + $0xb0] sm:$0xff]
    %v612 = vld [vmem:[%s588 + $0xb8] sm:$0xff]
    %v613 = vld [vmem:[%s588 + $0xc0] sm:$0xff]
    %v614 = vld [vmem:[%s588 + $0xc8] sm:$0xff]
    %v615 = vld [vmem:[%s588 + $0xd0] sm:$0xff]
    %v616 = vld [vmem:[%s588 + $0xd8] sm:$0xff]
    %v617 = vld [vmem:[%s588 + $0xe0] sm:$0xff]
    %v618 = vld [vmem:[%s588 + $0xe8] sm:$0xff]
    %v619 = vld [vmem:[%s588 + $0xf0] sm:$0xff]
    %v620 = vld [vmem:[%s588 + $0xf8] sm:$0xff]
    %v621 = vpack.c.bf16 %v564, %v562
    %v622 = vpack.c.bf16 %v565, %v563
    %v623 = vpack.c.bf16 %v568, %v566
    %v624 = vpack.c.bf16 %v569, %v567
    %v625 = vpack.c.bf16 %v572, %v570
    %v626 = vpack.c.bf16 %v573, %v571
    %v627 = vpack.c.bf16 %v576, %v574
    %v628 = vpack.c.bf16 %v577, %v575
    %v629 = vpack.c.bf16 %v580, %v578
    %v630 = vpack.c.bf16 %v581, %v579
    %v631 = vpack.c.bf16 %v584, %v582
    %v632 = vpack.c.bf16 %v585, %v583
    %v633 = vpack.c.bf16 %v586, %v586
    %v634 = vpack.c.bf16 %v587, %v587
    %s635 = scalar_lea.vmem %s4, 2
    %v636 = vld [vmem:[%s635] ss:$4 sm:$0x3]
    %v638 = vlaneseq
    %v639 = vshrl.u32 %v638, 7
    %v640 = vsub.s32 0, %v639
    %v641 = vrot.slane %v636, %v640
    %v642 = vlaneseq
    %v643 = vshrl.u32 %v642, 7
    %v644 = vsub.s32 1, %v643
    %v645 = vrot.slane %v636, %v644
    %v680 = vunpack.c.l.b16 %v589
    %v681 = vunpack.c.h.b16 %v589
    %v682 = vunpack.c.l.b16 %v590
    %v683 = vunpack.c.h.b16 %v590
    %v684 = vunpack.c.l.b16 %v591
    %v685 = vunpack.c.h.b16 %v591
    %v686 = vunpack.c.l.b16 %v592
    %v687 = vunpack.c.h.b16 %v592
    %v688 = vunpack.c.l.b16 %v593
    %v689 = vunpack.c.h.b16 %v593
    %v690 = vunpack.c.l.b16 %v594
    %v691 = vunpack.c.h.b16 %v594
    %v692 = vunpack.c.l.b16 %v595
    %v693 = vunpack.c.h.b16 %v595
    %v694 = vunpack.c.l.b16 %v596
    %v695 = vunpack.c.h.b16 %v596
    %v696 = vunpack.c.l.b16 %v597
    %v697 = vunpack.c.h.b16 %v597
    %v698 = vunpack.c.l.b16 %v598
    %v699 = vunpack.c.h.b16 %v598
    %v700 = vunpack.c.l.b16 %v599
    %v701 = vunpack.c.h.b16 %v599
    %v702 = vunpack.c.l.b16 %v600
    %v703 = vunpack.c.h.b16 %v600
    %v704 = vunpack.c.l.b16 %v601
    %v705 = vunpack.c.h.b16 %v601
    %v706 = vunpack.c.l.b16 %v602
    %v707 = vunpack.c.h.b16 %v602
    %v708 = vunpack.c.l.b16 %v603
    %v709 = vunpack.c.h.b16 %v603
    %v710 = vunpack.c.l.b16 %v604
    %v711 = vunpack.c.h.b16 %v604
    %v712 = vunpack.c.l.b16 %v605
    %v713 = vunpack.c.h.b16 %v605
    %v714 = vunpack.c.l.b16 %v606
    %v715 = vunpack.c.h.b16 %v606
    %v716 = vunpack.c.l.b16 %v607
    %v717 = vunpack.c.h.b16 %v607
    %v718 = vunpack.c.l.b16 %v608
    %v719 = vunpack.c.h.b16 %v608
    %v720 = vunpack.c.l.b16 %v609
    %v721 = vunpack.c.h.b16 %v609
    %v722 = vunpack.c.l.b16 %v610
    %v723 = vunpack.c.h.b16 %v610
    %v724 = vunpack.c.l.b16 %v611
    %v725 = vunpack.c.h.b16 %v611
    %v726 = vunpack.c.l.b16 %v612
    %v727 = vunpack.c.h.b16 %v612
    %v728 = vunpack.c.l.b16 %v613
    %v729 = vunpack.c.h.b16 %v613
    %v730 = vunpack.c.l.b16 %v614
    %v731 = vunpack.c.h.b16 %v614
    %v732 = vunpack.c.l.b16 %v615
    %v733 = vunpack.c.h.b16 %v615
    %v734 = vunpack.c.l.b16 %v616
    %v735 = vunpack.c.h.b16 %v616
    %v736 = vunpack.c.l.b16 %v617
    %v737 = vunpack.c.h.b16 %v617
    %v738 = vunpack.c.l.b16 %v618
    %v739 = vunpack.c.h.b16 %v618
    %v740 = vunpack.c.l.b16 %v619
    %v741 = vunpack.c.h.b16 %v619
    %v742 = vunpack.c.l.b16 %v620
    %v743 = vunpack.c.h.b16 %v620
    %v744 = vpack.c.b16 %v682, %v680
    %v745 = vpack.c.b16 %v683, %v681
    %v746 = vpack.c.b16 %v686, %v684
    %v747 = vpack.c.b16 %v687, %v685
    %v748 = vpack.c.b16 %v690, %v688
    %v749 = vpack.c.b16 %v691, %v689
    %v750 = vpack.c.b16 %v694, %v692
    %v751 = vpack.c.b16 %v695, %v693
    %v752 = vpack.c.b16 %v698, %v696
    %v753 = vpack.c.b16 %v699, %v697
    %v754 = vpack.c.b16 %v702, %v700
    %v755 = vpack.c.b16 %v703, %v701
    %v756 = vpack.c.b16 %v706, %v704
    %v757 = vpack.c.b16 %v707, %v705
    %v758 = vpack.c.b16 %v710, %v708
    %v759 = vpack.c.b16 %v711, %v709
    %v760 = vpack.c.b16 %v714, %v712
    %v761 = vpack.c.b16 %v715, %v713
    %v762 = vpack.c.b16 %v718, %v716
    %v763 = vpack.c.b16 %v719, %v717
    %v764 = vpack.c.b16 %v722, %v720
    %v765 = vpack.c.b16 %v723, %v721
    %v766 = vpack.c.b16 %v726, %v724
    %v767 = vpack.c.b16 %v727, %v725
    %v768 = vpack.c.b16 %v730, %v728
    %v769 = vpack.c.b16 %v731, %v729
    %v770 = vpack.c.b16 %v734, %v732
    %v771 = vpack.c.b16 %v735, %v733
    %v772 = vpack.c.b16 %v738, %v736
    %v773 = vpack.c.b16 %v739, %v737
    %v774 = vpack.c.b16 %v742, %v740
    %v775 = vpack.c.b16 %v743, %v741
    %808 = vmatprep.subr.bf16.mxu0 %v745
    %809 = vmatpush1.bf16.msra.mxu0 %v744
    %810 = vmatprep.subr.bf16.mxu0 %v747
    %811 = vmatpush1.bf16.msra.mxu0 %v746
    %812 = vmatprep.subr.bf16.mxu0 %v749
    %813 = vmatpush1.bf16.msra.mxu0 %v748
    %814 = vmatprep.subr.bf16.mxu0 %v751
    %815 = vmatpush1.bf16.msra.mxu0 %v750
    %816 = vmatprep.subr.bf16.mxu0 %v753
    %817 = vmatpush1.bf16.msra.mxu0 %v752
    %818 = vmatprep.subr.bf16.mxu0 %v755
    %819 = vmatpush1.bf16.msra.mxu0 %v754
    %820 = vmatprep.subr.bf16.mxu0 %v757
    %821 = vmatpush1.bf16.msra.mxu0 %v756
    %822 = vmatprep.subr.bf16.mxu0 %v759
    %823 = vmatpush1.bf16.msra.mxu0 %v758
    %824 = vmatprep.subr.bf16.mxu0 %v761
    %825 = vmatpush1.bf16.msra.mxu0 %v760
    %826 = vmatprep.subr.bf16.mxu0 %v763
    %827 = vmatpush1.bf16.msra.mxu0 %v762
    %828 = vmatprep.subr.bf16.mxu0 %v765
    %829 = vmatpush1.bf16.msra.mxu0 %v764
    %830 = vmatprep.subr.bf16.mxu0 %v767
    %831 = vmatpush1.bf16.msra.mxu0 %v766
    %832 = vmatprep.subr.bf16.mxu0 %v769
    %833 = vmatpush1.bf16.msra.mxu0 %v768
    %834 = vmatprep.subr.bf16.mxu0 %v771
    %835 = vmatpush1.bf16.msra.mxu0 %v770
    %836 = vmatprep.subr.bf16.mxu0 %v773
    %837 = vmatpush1.bf16.msra.mxu0 %v772
    %838 = vmatprep.subr.bf16.mxu0 %v775
    %839 = vmatpush1.bf16.msra.mxu0 %v774
    %840 = vmatprep.mubr.bf16.mxu0 %v622
    %841 = vmatmul.mubr.bf16.gmra.mrb[0].mxu0 %v621
    %v842 = vpop.f32.mrb[0].mxu0
    %v843 = vadd.f32 %v641, %v842
    %v844 = vpop.f32.mrb[0].mxu0
    %v845 = vadd.f32 %v645, %v844
    %v846 = vpop.f32.mrb[0].mxu0
    %v847 = vadd.f32 %v641, %v846
    %v848 = vpop.f32.mrb[0].mxu0
    %v849 = vadd.f32 %v645, %v848
    %850 = vmatprep.mubr.bf16.mxu0 %v624
    %851 = vmatmul.mubr.bf16.gmra.mrb[0].mxu0 %v623
    %v852 = vpop.f32.mrb[0].mxu0
    %v853 = vadd.f32 %v641, %v852
    %v854 = vpop.f32.mrb[0].mxu0
    %v855 = vadd.f32 %v645, %v854
    %v856 = vpop.f32.mrb[0].mxu0
    %v857 = vadd.f32 %v641, %v856
    %v858 = vpop.f32.mrb[0].mxu0
    %v859 = vadd.f32 %v645, %v858
    %860 = vmatprep.mubr.bf16.mxu0 %v626
    %861 = vmatmul.mubr.bf16.gmra.mrb[0].mxu0 %v625
    %v862 = vpop.f32.mrb[0].mxu0
    %v863 = vadd.f32 %v641, %v862
    %v864 = vpop.f32.mrb[0].mxu0
    %v865 = vadd.f32 %v645, %v864
    %v866 = vpop.f32.mrb[0].mxu0
    %v867 = vadd.f32 %v641, %v866
    %v868 = vpop.f32.mrb[0].mxu0
    %v869 = vadd.f32 %v645, %v868
    %870 = vmatprep.mubr.bf16.mxu0 %v628
    %871 = vmatmul.mubr.bf16.gmra.mrb[0].mxu0 %v627
    %v872 = vpop.f32.mrb[0].mxu0
    %v873 = vadd.f32 %v641, %v872
    %v874 = vpop.f32.mrb[0].mxu0
    %v875 = vadd.f32 %v645, %v874
    %v876 = vpop.f32.mrb[0].mxu0
    %v877 = vadd.f32 %v641, %v876
    %v878 = vpop.f32.mrb[0].mxu0
    %v879 = vadd.f32 %v645, %v878
    %880 = vmatprep.mubr.bf16.mxu0 %v630
    %881 = vmatmul.mubr.bf16.gmra.mrb[0].mxu0 %v629
    %v882 = vpop.f32.mrb[0].mxu0
    %v883 = vadd.f32 %v641, %v882
    %v884 = vpop.f32.mrb[0].mxu0
    %v885 = vadd.f32 %v645, %v884
    %v886 = vpop.f32.mrb[0].mxu0
    %v887 = vadd.f32 %v641, %v886
    %v888 = vpop.f32.mrb[0].mxu0
    %v889 = vadd.f32 %v645, %v888
    %890 = vmatprep.mubr.bf16.mxu0 %v632
    %891 = vmatmul.mubr.bf16.gmra.mrb[0].mxu0 %v631
    %v892 = vpop.f32.mrb[0].mxu0
    %v893 = vadd.f32 %v641, %v892
    %v894 = vpop.f32.mrb[0].mxu0
    %v895 = vadd.f32 %v645, %v894
    %v896 = vpop.f32.mrb[0].mxu0
    %v897 = vadd.f32 %v641, %v896
    %v898 = vpop.f32.mrb[0].mxu0
    %v899 = vadd.f32 %v645, %v898
    %900 = vmatprep.mubr.bf16.mxu0 %v634
    %901 = vmatmul.mubr.bf16.gmra.mrb[0].mxu0 %v633
    %v902 = vpop.f32.mrb[0].mxu0
    %v903 = vadd.f32 %v641, %v902
    %v904 = vpop.f32.mrb[0].mxu0
    %v905 = vadd.f32 %v645, %v904
    %v906 = vpop.f32.mrb[0].mxu0
    %v907 = vpop.f32.mrb[0].mxu0
    %908 = vdwg.mxu0
    %v909 = vtanh.pop %v843
    %v910 = vtanh.pop %v845
    %v911 = vtanh.pop %v847
    %v912 = vtanh.pop %v849
    %v913 = vtanh.pop %v853
    %v914 = vtanh.pop %v855
    %v915 = vtanh.pop %v857
    %v916 = vtanh.pop %v859
    %v917 = vtanh.pop %v863
    %v918 = vtanh.pop %v865
    %v919 = vtanh.pop %v867
    %v920 = vtanh.pop %v869
    %v921 = vtanh.pop %v873
    %v922 = vtanh.pop %v875
    %v923 = vtanh.pop %v877
    %v924 = vtanh.pop %v879
    %v925 = vtanh.pop %v883
    %v926 = vtanh.pop %v885
    %v927 = vtanh.pop %v887
    %v928 = vtanh.pop %v889
    %v929 = vtanh.pop %v893
    %v930 = vtanh.pop %v895
    %v931 = vtanh.pop %v897
    %v932 = vtanh.pop %v899
    %v933 = vtanh.pop %v903
    %v934 = vtanh.pop %v905
    %v935 = vmul.f32 %v909, %v910
    %v936 = vmul.f32 %v911, %v912
    %v937 = vmul.f32 %v913, %v914
    %v938 = vmul.f32 %v915, %v916
    %v939 = vmul.f32 %v917, %v918
    %v940 = vmul.f32 %v919, %v920
    %v941 = vmul.f32 %v921, %v922
    %v942 = vmul.f32 %v923, %v924
    %v943 = vmul.f32 %v925, %v926
    %v944 = vmul.f32 %v927, %v928
    %v945 = vmul.f32 %v929, %v930
    %v946 = vmul.f32 %v931, %v932
    %v947 = vmul.f32 %v933, %v934
    %v948 = vld [vmem:[%s3] sm:$0xf]
    %v949 = vld [vmem:[%s3 + $0x4] sm:$0xf]
    %v950 = vld [vmem:[%s3 + $0x8] sm:$0xf]
    %v951 = vld [vmem:[%s3 + $0xc] sm:$0xf]
    %v952 = vld [vmem:[%s3 + $0x10] sm:$0xf]
    %v953 = vld [vmem:[%s3 + $0x14] sm:$0xf]
    %v954 = vld [vmem:[%s3 + $0x18] sm:$0xf]
    %v955 = vld [vmem:[%s3 + $0x1c] sm:$0xf]
    %v956 = vld [vmem:[%s3 + $0x20] sm:$0xf]
    %v957 = vld [vmem:[%s3 + $0x24] sm:$0xf]
    %v958 = vld [vmem:[%s3 + $0x28] sm:$0xf]
    %v959 = vld [vmem:[%s3 + $0x2c] sm:$0xf]
    %v960 = vld [vmem:[%s3 + $0x30] sm:$0xf]
    %v961 = vld [vmem:[%s3 + $0x34] sm:$0xf]
    %v962 = vld [vmem:[%s3 + $0x38] sm:$0xf]
    %v963 = vld [vmem:[%s3 + $0x3c] sm:$0xf]
    %v964 = vpack.c.bf16 %v936, %v935
    %v965 = vpack.c.bf16 %v938, %v937
    %v966 = vpack.c.bf16 %v940, %v939
    %v967 = vpack.c.bf16 %v942, %v941
    %v968 = vpack.c.bf16 %v944, %v943
    %v969 = vpack.c.bf16 %v946, %v945
    %v970 = vpack.c.bf16 %v947, %v947
    %v971 = vld [vmem:[%s4 + $0x3] sm:$0x1]
    %v972 = vlaneseq
    %v973 = vshrl.u32 %v972, 7
    %v974 = vsub.s32 0, %v973
    %v975 = vrot.slane %v971, %v974
    %v992 = vunpack.c.l.b16 %v948
    %v993 = vunpack.c.l.b16 %v949
    %v994 = vunpack.c.l.b16 %v950
    %v995 = vunpack.c.l.b16 %v951
    %v996 = vunpack.c.l.b16 %v952
    %v997 = vunpack.c.l.b16 %v953
    %v998 = vunpack.c.l.b16 %v954
    %v999 = vunpack.c.l.b16 %v955
    %v1000 = vunpack.c.l.b16 %v956
    %v1001 = vunpack.c.l.b16 %v957
    %v1002 = vunpack.c.l.b16 %v958
    %v1003 = vunpack.c.l.b16 %v959
    %v1004 = vunpack.c.l.b16 %v960
    %v1005 = vunpack.c.l.b16 %v961
    %v1006 = vunpack.c.l.b16 %v962
    %v1007 = vunpack.c.l.b16 %v963
    %v1008 = vpack.c.b16 %v993, %v992
    %v1009 = vpack.c.b16 %v995, %v994
    %v1010 = vpack.c.b16 %v997, %v996
    %v1011 = vpack.c.b16 %v999, %v998
    %v1012 = vpack.c.b16 %v1001, %v1000
    %v1013 = vpack.c.b16 %v1003, %v1002
    %v1014 = vpack.c.b16 %v1005, %v1004
    %v1015 = vpack.c.b16 %v1007, %v1006
    %1024 = vmatprep.subr.bf16.mxu0 0
    %1025 = vmatpush1.bf16.msra.mxu0 %v1008
    %1026 = vmatprep.subr.bf16.mxu0 0
    %1027 = vmatpush1.bf16.msra.mxu0 %v1009
    %1028 = vmatprep.subr.bf16.mxu0 0
    %1029 = vmatpush1.bf16.msra.mxu0 %v1010
    %1030 = vmatprep.subr.bf16.mxu0 0
    %1031 = vmatpush1.bf16.msra.mxu0 %v1011
    %1032 = vmatprep.subr.bf16.mxu0 0
    %1033 = vmatpush1.bf16.msra.mxu0 %v1012
    %1034 = vmatprep.subr.bf16.mxu0 0
    %1035 = vmatpush1.bf16.msra.mxu0 %v1013
    %1036 = vmatprep.subr.bf16.mxu0 0
    %1037 = vmatpush1.bf16.msra.mxu0 %v1014
    %1038 = vmatprep.subr.bf16.mxu0 0
    %1039 = vmatpush1.bf16.msra.mxu0 %v1015
    %1040 = vmatprep.subr.bf16.mxu0 0
    %1041 = vmatpush1.bf16.msra.mxu0 0
    %1042 = vmatprep.subr.bf16.mxu0 0
    %1043 = vmatpush1.bf16.msra.mxu0 0
    %1044 = vmatprep.subr.bf16.mxu0 0
    %1045 = vmatpush1.bf16.msra.mxu0 0
    %1046 = vmatprep.subr.bf16.mxu0 0
    %1047 = vmatpush1.bf16.msra.mxu0 0
    %1048 = vmatprep.subr.bf16.mxu0 0
    %1049 = vmatpush1.bf16.msra.mxu0 0
    %1050 = vmatprep.subr.bf16.mxu0 0
    %1051 = vmatpush1.bf16.msra.mxu0 0
    %1052 = vmatprep.subr.bf16.mxu0 0
    %1053 = vmatpush1.bf16.msra.mxu0 0
    %1054 = vmatprep.subr.bf16.mxu0 0
    %1055 = vmatpush1.bf16.msra.mxu0 0
    %1056 = vmatprep.mubr.bf16.mxu0 0
    %1057 = vmatmul.mubr.bf16.gmra.mrb[0].mxu0 %v964
    %v1058 = vpop.f32.mrb[0].mxu0
    %v1059 = vadd.f32 %v975, %v1058
    %v1060 = vpop.f32.mrb[0].mxu0
    %v1061 = vpop.f32.mrb[0].mxu0
    %v1062 = vadd.f32 %v975, %v1061
    %v1063 = vpop.f32.mrb[0].mxu0
    %1064 = vmatprep.mubr.bf16.mxu0 0
    %1065 = vmatmul.mubr.bf16.gmra.mrb[0].mxu0 %v965
    %v1066 = vpop.f32.mrb[0].mxu0
    %v1067 = vadd.f32 %v975, %v1066
    %v1068 = vpop.f32.mrb[0].mxu0
    %v1069 = vpop.f32.mrb[0].mxu0
    %v1070 = vadd.f32 %v975, %v1069
    %v1071 = vpop.f32.mrb[0].mxu0
    %1072 = vmatprep.mubr.bf16.mxu0 0
    %1073 = vmatmul.mubr.bf16.gmra.mrb[0].mxu0 %v966
    %v1074 = vpop.f32.mrb[0].mxu0
    %v1075 = vadd.f32 %v975, %v1074
    %v1076 = vpop.f32.mrb[0].mxu0
    %v1077 = vpop.f32.mrb[0].mxu0
    %v1078 = vadd.f32 %v975, %v1077
    %v1079 = vpop.f32.mrb[0].mxu0
    %1080 = vmatprep.mubr.bf16.mxu0 0
    %1081 = vmatmul.mubr.bf16.gmra.mrb[0].mxu0 %v967
    %v1082 = vpop.f32.mrb[0].mxu0
    %v1083 = vadd.f32 %v975, %v1082
    %v1084 = vpop.f32.mrb[0].mxu0
    %v1085 = vpop.f32.mrb[0].mxu0
    %v1086 = vadd.f32 %v975, %v1085
    %v1087 = vpop.f32.mrb[0].mxu0
    %1088 = vmatprep.mubr.bf16.mxu0 0
    %1089 = vmatmul.mubr.bf16.gmra.mrb[0].mxu0 %v968
    %v1090 = vpop.f32.mrb[0].mxu0
    %v1091 = vadd.f32 %v975, %v1090
    %v1092 = vpop.f32.mrb[0].mxu0
    %v1093 = vpop.f32.mrb[0].mxu0
    %v1094 = vadd.f32 %v975, %v1093
    %v1095 = vpop.f32.mrb[0].mxu0
    %1096 = vmatprep.mubr.bf16.mxu0 0
    %1097 = vmatmul.mubr.bf16.gmra.mrb[0].mxu0 %v969
    %v1098 = vpop.f32.mrb[0].mxu0
    %v1099 = vadd.f32 %v975, %v1098
    %v1100 = vpop.f32.mrb[0].mxu0
    %v1101 = vpop.f32.mrb[0].mxu0
    %v1102 = vadd.f32 %v975, %v1101
    %v1103 = vpop.f32.mrb[0].mxu0
    %1104 = vmatprep.mubr.bf16.mxu0 0
    %1105 = vmatmul.mubr.bf16.gmra.mrb[0].mxu0 %v970
    %v1106 = vpop.f32.mrb[0].mxu0
    %v1107 = vadd.f32 %v975, %v1106
    %v1108 = vpop.f32.mrb[0].mxu0
    %v1109 = vpop.f32.mrb[0].mxu0
    %v1110 = vpop.f32.mrb[0].mxu0
    %1111 = vdwg.mxu0
    %1112 = vst [vmem:[#allocation5] sm:$0xff] %v1059
    %1113 = vst [vmem:[#allocation5 + $0x8] sm:$0xff] %v1062
    %1114 = vst [vmem:[#allocation5 + $0x10] sm:$0xff] %v1067
    %1115 = vst [vmem:[#allocation5 + $0x18] sm:$0xff] %v1070
    %1116 = vst [vmem:[#allocation5 + $0x20] sm:$0xff] %v1075
    %1117 = vst [vmem:[#allocation5 + $0x28] sm:$0xff] %v1078
    %1118 = vst [vmem:[#allocation5 + $0x30] sm:$0xff] %v1083
    %1119 = vst [vmem:[#allocation5 + $0x38] sm:$0xff] %v1086
    %1120 = vst [vmem:[#allocation5 + $0x40] sm:$0xff] %v1091
    %1121 = vst [vmem:[#allocation5 + $0x48] sm:$0xff] %v1094
    %1122 = vst [vmem:[#allocation5 + $0x50] sm:$0xff] %v1099
    %1123 = vst [vmem:[#allocation5 + $0x58] sm:$0xff] %v1102
    %1124 = vst [vmem:[#allocation5 + $0x60] sm:$0xff] %v1107
    // Predicated region
    $region26: #{tpu_custom_call.1} parent=1 // pred_check
      _
    $region27: #{tpu_custom_call.1} parent=1 // pred_check_branch
      %1126 = sbr.rel (0) target = $region29
    $region28: #{tpu_custom_call.1} parent=1 // pred_region
      %s1128 = ssub.s32 1664, 1664
      %1129 = vsyncadd [#allocation4], %s1128
      %s1130 = sshll.u32 [#allocation5], 4
      %s1131 = int_to_ptr.vmem [resolvable:$true] %s1130
      %1136 = dma.vmem_to_hbm [thread:$0]  %s1131, 1664, %s5, [#allocation4], 128, 128, 8
    $region29: #{tpu_custom_call.1} parent=1 // pred_fallthru
      _
    // Predicated region
    $region30: #{tpu_custom_call.1} parent=1 // pred_check
      _
    $region31: #{tpu_custom_call.1} parent=1 // pred_check_branch
      %1138 = sbr.rel (0) target = $region33
    $region32: #{tpu_custom_call.1} parent=1 // pred_region
      %1139 = dma.done [#allocation4], 1664
    $region33: #{tpu_custom_call.1} parent=1 // pred_fallthru
      _
    %1140 = vsyncpa [#allocation3], 1
    %1141 = vsyncpa [#allocation4], 1

</llo_original>
